<compile_context>
chip_gen: v6e
topology: v6e:2x2x1
jax: 0.10.0
libtpu: 0.0.40
codegen_flags: <defaults>
</compile_context>

<pallas_src>
import functools

import jax
import jax.numpy as jnp
from jax.experimental import pallas as pl
from jax.experimental.pallas import tpu as pltpu


def _cdiv(a, b):
    return -(-a // b)


def _round_up(a, b):
    return _cdiv(a, b) * b


def _int_scales(scale_factor):
    if isinstance(scale_factor, (tuple, list)):
        sh, sw = scale_factor
    else:
        sh = sw = scale_factor
    sh_i, sw_i = int(sh), int(sw)
    if sh_i != sh or sw_i != sw or sh_i < 1 or sw_i < 1:
        raise ValueError(
            "Only positive integer scale factors are supported "
            f"(got {scale_factor!r})."
        )
    return sh_i, sw_i


def _vmem_budget():
    """Returns (usable VMEM budget, vmem_limit_bytes) per TPU generation."""
    cap = 64 << 20
    try:
        cap = int(pltpu.get_tpu_info().vmem_capacity_bytes)
    except Exception:
        pass  # conservative default (safe on every generation)
    if cap <= (96 << 20):          # v7x-class: 64 MiB VMEM per TensorCore
        return 36 << 20, 48 << 20
    return 56 << 20, 96 << 20      # v5e / v6e: 128 MiB physical VMEM


def _nearest_upsample_kernel(x_ref, r_ref, o_ref, *, reps, rep_stride, tile_out,
                             k_tiled):
    # x_ref: (bm, Kt) input rows; r_ref: (Kt, tile_out) one-hot repeat matrix
    # (resident across the grid); o_ref: (bm, out_cols) output rows.
    x = x_ref[...]
    if x.dtype != r_ref.dtype:          # static (trace-time) dtype dispatch
        x = x.astype(r_ref.dtype)
    # R is one-hot, so accumulating straight into the compute/output dtype is
    # exact and avoids a separate f32 (bm, tile_out) temporary + cast pass.
    res = jnp.dot(x, r_ref[...], preferred_element_type=r_ref.dtype)
    res = res.astype(o_ref.dtype)       # no-op when dtypes already match
    if k_tiled:
        base = pl.program_id(1) * tile_out
    else:
        base = 0                        # static offset when there is one K tile
    for r in range(reps):               # statically unrolled: 1 or sh stores
        start = r * rep_stride + base
        if k_tiled:
            start = pl.multiple_of(start, 128)   # lane-aligned dynamic offset
        o_ref[:, pl.ds(start, tile_out)] = res


@functools.partial(jax.jit, static_argnames=("scale_factor",))
def interpolate_nearest(x, scale_factor):
    """Equivalent of interpolate(scale_factor, mode='nearest').forward(x)."""
    N, C, H, W = x.shape
    sh, sw = _int_scales(scale_factor)
    Ho, Wo = H * sh, W * sw
    out_cols = sh * Wo

    if x.dtype in (jnp.float32, jnp.bfloat16):
        compute_dtype = x.dtype
    elif x.dtype == jnp.float16:
        compute_dtype = jnp.float32     # exact round-trip through f32 for nearest
    else:
        # TODO(synk): integer / float64 inputs need an exact non-matmul copy path.
        raise ValueError(f"interpolate_nearest: unsupported dtype {x.dtype}")

    # ---- mode selection ----------------------------------------------------
    # Slice-store (sh unfolded from R) only when every store stays lane-aligned.
    can_slice_store = (sh == 1) or (Wo % 128 == 0)

    k_tile = W
    if can_slice_store and W >= 512 and W % 128 == 0:
        for cand in (512, 256, 128):    # largest lane-aligned divisor of W
            if W % cand == 0:
                k_tile = cand
                break
    num_k_tiles = W // k_tile
    k_tiled = num_k_tiles > 1

    if can_slice_store:
        # Width-only one-hot R; identical for every K tile (uniform upsample).
        r_cols = k_tile * sw
        src = jnp.arange(r_cols, dtype=jnp.int32) // sw
        reps = sh
    else:
        # Fold the sh row-repeat into R (single full-width store).
        r_cols = out_cols
        src = (jnp.arange(r_cols, dtype=jnp.int32) % Wo) // sw
        reps = 1
    rwt = (src[None, :] == jnp.arange(k_tile, dtype=jnp.int32)[:, None]
           ).astype(compute_dtype)

    # ---- flatten (contiguous reshapes, no data movement) --------------------
    M_total = N * C * H
    x_flat = x.reshape(M_total, W)

    in_item = x.dtype.itemsize
    out_item = in_item
    comp_item = jnp.dtype(compute_dtype).itemsize

    # ---- generation-aware VMEM budget & block sizing ------------------------
    budget, vmem_limit = _vmem_budget()
    r_block_bytes = k_tile * r_cols * comp_item           # resident R (x2 buffered)
    per_row_bytes = (2 * k_tile * in_item                  # input block, double-buffered
                     + 2 * out_cols * out_item             # output block, double-buffered
                     + r_cols * comp_item)                 # live matmul result
    avail = max(budget - 2 * r_block_bytes, 8 * per_row_bytes)
    row_align = 8 if in_item >= 4 else 16
    bm_cap = max(row_align, (avail // per_row_bytes) // row_align * row_align)

    TARGET_STEPS = 8                    # >= 4 pipeline steps per TC on 2-TC parts
    MIN_OUT_BLOCK_BYTES = 1 << 20       # keep each output DMA block >= ~1 MiB
    rows_for_min_block = _cdiv(MIN_OUT_BLOCK_BYTES, out_cols * out_item)
    bm = max(_cdiv(M_total, TARGET_STEPS), rows_for_min_block, row_align)
    bm = _round_up(bm, row_align)
    bm = min(bm, bm_cap)
    if bm >= M_total:
        bm = M_total                    # full-extent block is always legal
    num_row_blocks = _cdiv(M_total, bm)

    cost = pl.CostEstimate(
        flops=2 * M_total * W * r_cols,
        transcendentals=0,
        bytes_accessed=(M_total * W * in_item
                        + M_total * out_cols * out_item
                        + k_tile * r_cols * comp_item),
    )

    kernel = functools.partial(
        _nearest_upsample_kernel,
        reps=reps, rep_stride=Wo, tile_out=r_cols, k_tiled=k_tiled)

    out_flat = pl.pallas_call(
        kernel,
        out_shape=jax.ShapeDtypeStruct((M_total, out_cols), x.dtype),
        grid=(num_row_blocks, num_k_tiles),
        in_specs=[
            pl.BlockSpec((bm, k_tile), lambda i, j: (i, j)),
            pl.BlockSpec((k_tile, r_cols), lambda i, j: (0, 0)),  # resident constant
        ],
        # Output block is revisited across the K-tile axis (disjoint column
        # slices per tile), so that axis is "arbitrary"; rows are "parallel".
        out_specs=pl.BlockSpec((bm, out_cols), lambda i, j: (i, 0)),
        compiler_params=pltpu.CompilerParams(
            dimension_semantics=("parallel", "arbitrary"),
            vmem_limit_bytes=vmem_limit,
        ),
        cost_estimate=cost,
    )(x_flat, rwt)

    # (N*C*H, sh*Wo) -> (N, C, H*sh, Wo): contiguous row-major reshape (free).
    return out_flat.reshape(N, C, Ho, Wo)


if __name__ == "__main__":
    key = jax.random.PRNGKey(0)

    # Small UNet-decoder-like case (folded-R path: Wo = 32 is not lane-aligned).
    x = jax.random.normal(key, (2, 4, 16, 16), dtype=jnp.float32)
    out = jax.block_until_ready(interpolate_nearest(x, 2))
    ref = jnp.repeat(jnp.repeat(x, 2, axis=2), 2, axis=3)
    assert out.shape == (2, 4, 32, 32) and out.dtype == x.dtype
    assert jnp.allclose(out, ref), "mismatch (folded-R path)"

    # Tuple scale factor goes through the same path.
    out2 = jax.block_until_ready(interpolate_nearest(x, (2, 2)))
    assert jnp.allclose(out2, ref)

    # Lane-aligned width (Wo = 128): exercises the sh-unfold / slice-store path.
    xb = jax.random.normal(key, (1, 2, 8, 64), dtype=jnp.float32)
    outb = jax.block_until_ready(interpolate_nearest(xb, 2))
    refb = jnp.repeat(jnp.repeat(xb, 2, axis=2), 2, axis=3)
    assert jnp.allclose(outb, refb), "mismatch (sh-unfold path)"

    # Wide rows (W = 1024): exercises the K-tiled contraction path.
    xc = jax.random.normal(key, (1, 1, 4, 1024), dtype=jnp.float32)
    outc = jax.block_until_ready(interpolate_nearest(xc, 2))
    refc = jnp.repeat(jnp.repeat(xc, 2, axis=2), 2, axis=3)
    assert jnp.allclose(outc, refc), "mismatch (K-tiled path)"

    print("KERNEL_OK")
</pallas_src>

<mosaic_0001>
module attributes {stable_mosaic.version = 11 : i64} {
  func.func @_nearest_upsample_kernel(%arg0: i32, %arg1: i32, %arg2: memref<128x16xf32, #tpu.memory_space<vmem>>, %arg3: memref<16x64xf32, #tpu.memory_space<vmem>>, %arg4: memref<128x64xf32, #tpu.memory_space<vmem>>) attributes {dimension_semantics = [#tpu.dimension_semantics<parallel>, #tpu.dimension_semantics<arbitrary>], iteration_bounds = array<i64: 1, 1>, scalar_prefetch = 0 : i64, scratch_operands = 0 : i64, tpu.core_type = #tpu.core_type<tc>, window_params = [{transform_indices = @transform_0, window_bounds = array<i64: 128, 16>}, {pipeline_mode = #tpu.pipeline_mode<synchronous>, transform_indices = @transform_1, window_bounds = array<i64: 16, 64>}, {transform_indices = @transform_2, window_bounds = array<i64: 128, 64>}]} {
    %c0 = arith.constant 0 : index
    %c0_0 = arith.constant 0 : index
    %0 = vector.load %arg2[%c0, %c0_0] : memref<128x16xf32, #tpu.memory_space<vmem>>, vector<128x16xf32>
    %c0_1 = arith.constant 0 : index
    %c0_2 = arith.constant 0 : index
    %1 = vector.load %arg3[%c0_1, %c0_2] : memref<16x64xf32, #tpu.memory_space<vmem>>, vector<16x64xf32>
    %cst = arith.constant dense<0.000000e+00> : vector<128x64xf32>
    %2 = tpu.matmul %0, %1, %cst {dimension_numbers = #tpu.dot_dimension_numbers<[1], [0], [0], [1], [0, 0, 1, 1], [], []>} : vector<128x16xf32>, vector<16x64xf32>, vector<128x64xf32> -> vector<128x64xf32>
    %c0_3 = arith.constant 0 : index
    %c0_4 = arith.constant 0 : index
    %3 = vector.load %arg4[%c0_3, %c0_4] : memref<128x64xf32, #tpu.memory_space<vmem>>, vector<128x64xf32>
    tpu.vector_store %arg4[%c0_3, %c0_4], %2 {strides = array<i32>} : memref<128x64xf32, #tpu.memory_space<vmem>>, vector<128x64xf32>,
    return
  }
  func.func @transform_0(%arg0: i32, %arg1: i32) -> (i32, i32) {
    %c0_i32 = arith.constant 0 : i32
    return %arg0, %arg1 : i32, i32
  }
  func.func @transform_1(%arg0: i32, %arg1: i32) -> (i32, i32) {
    %c0_i32 = arith.constant 0 : i32
    %c0_i32_0 = arith.constant 0 : i32
    %c0_i32_1 = arith.constant 0 : i32
    return %c0_i32, %c0_i32_0 : i32, i32
  }
  func.func @transform_2(%arg0: i32, %arg1: i32) -> (i32, i32) {
    %c0_i32 = arith.constant 0 : i32
    %c0_i32_0 = arith.constant 0 : i32
    return %arg0, %c0_i32 : i32, i32
  }
}

</mosaic_0001>

<llo_original>
// kernel: interpolate_nearest.1
$region0: #{interpolate_nearest.1}
  #allocation0 [shape = 'u32[]', space=smem, size = 0x4, offset = 0x4, fixed_abs, tag = 'smem constant byte address 0x4 - core index']
  #allocation1 [shape = 'u32[144,128]{1,0:T(1,128)}', space=vmem, size = 0x12000, scoped, tag = 'internal scratch']
  %s0 = inlined_call_operand.hbm [shape: f32[128,16], index: 0, kind: input, shape index: {}]
  %s1 = inlined_call_operand.vmem [shape: f32[16,64], index: 1, kind: input, shape index: {}]
  %s2 = inlined_call_operand.vmem [shape: f32[128,64], index: 2, kind: output, shape index: {}]
  %s3 = sld [smem:[#allocation0]]
  $region22: #{interpolate_nearest.1} parent=0
    _
  %s5 = ssub.s32 1, %s3
  %s6 = scalar_select 0, %s5, %s3
  $region1: #{interpolate_nearest.1} parent=0
    #allocation2 [shape = 'u8[65536]{0}', space=vmem, size = 0x10000, scoped, tag = 'input window, operand 0, single buffered']
    #allocation3 [shape = 's32[1]{0}', space=sflag, size = 0x4, scoped, tag = 'scoped memory for interpolate_nearest.1']
    %7 = vsyncpa [#allocation3], 0
    // Predicated region
    $region2: #{interpolate_nearest.1} parent=1 // pred_check
      _
    $region3: #{interpolate_nearest.1} parent=1 // pred_check_branch
      %9 = sbr.rel (0) target = $region5
    $region4: #{interpolate_nearest.1} parent=1 // pred_region
      %s11 = ssub.s32 2048, 2048
      %12 = vsyncadd [#allocation3], %s11
      %s13 = sshll.u32 [#allocation2], 4
      %s14 = int_to_ptr.vmem [resolvable:$true] %s13
      %19 = dma.hbm_to_vmem [thread:$0]  %s0, 2048, %s14, [#allocation3], 128, 128, 8
    $region5: #{interpolate_nearest.1} parent=1 // pred_fallthru
      _
    // Predicated region
    $region6: #{interpolate_nearest.1} parent=1 // pred_check
      _
    $region7: #{interpolate_nearest.1} parent=1 // pred_check_branch
      %21 = sbr.rel (0) target = $region9
    $region8: #{interpolate_nearest.1} parent=1 // pred_region
      _
    $region9: #{interpolate_nearest.1} parent=1 // pred_fallthru
      _
    // Predicated region
    $region10: #{interpolate_nearest.1} parent=1 // pred_check
      _
    $region11: #{interpolate_nearest.1} parent=1 // pred_check_branch
      %23 = sbr.rel (0) target = $region13
    $region12: #{interpolate_nearest.1} parent=1 // pred_region
      %24 = dma.done [#allocation3], 2048
    $region13: #{interpolate_nearest.1} parent=1 // pred_fallthru
      _
    %v25 = vld [vmem:[#allocation2] sm:$0xff]
    %v26 = vld [vmem:[#allocation2 + $0x8] sm:$0xff]
    %v27 = vld [vmem:[#allocation2 + $0x10] sm:$0xff]
    %v28 = vld [vmem:[#allocation2 + $0x18] sm:$0xff]
    %v29 = vld [vmem:[#allocation2 + $0x20] sm:$0xff]
    %v30 = vld [vmem:[#allocation2 + $0x28] sm:$0xff]
    %v31 = vld [vmem:[#allocation2 + $0x30] sm:$0xff]
    %v32 = vld [vmem:[#allocation2 + $0x38] sm:$0xff]
    %v33 = vld [vmem:[#allocation2 + $0x40] sm:$0xff]
    %v34 = vld [vmem:[#allocation2 + $0x48] sm:$0xff]
    %v35 = vld [vmem:[#allocation2 + $0x50] sm:$0xff]
    %v36 = vld [vmem:[#allocation2 + $0x58] sm:$0xff]
    %v37 = vld [vmem:[#allocation2 + $0x60] sm:$0xff]
    %v38 = vld [vmem:[#allocation2 + $0x68] sm:$0xff]
    %v39 = vld [vmem:[#allocation2 + $0x70] sm:$0xff]
    %v40 = vld [vmem:[#allocation2 + $0x78] sm:$0xff]
    %v41 = vld [vmem:[%s1] sm:$0xff]
    %v42 = vld [vmem:[%s1 + $0x8] sm:$0xff]
    %vm43 = vcmask 130048
    %v45 = vsel %vm43, %v25, 0
    %v48 = vsel %vm43, %v26, 0
    %v51 = vsel %vm43, %v27, 0
    %v54 = vsel %vm43, %v28, 0
    %v57 = vsel %vm43, %v29, 0
    %v60 = vsel %vm43, %v30, 0
    %v63 = vsel %vm43, %v31, 0
    %v66 = vsel %vm43, %v32, 0
    %v69 = vsel %vm43, %v33, 0
    %v72 = vsel %vm43, %v34, 0
    %v75 = vsel %vm43, %v35, 0
    %v78 = vsel %vm43, %v36, 0
    %v81 = vsel %vm43, %v37, 0
    %v84 = vsel %vm43, %v38, 0
    %v87 = vsel %vm43, %v39, 0
    %v90 = vsel %vm43, %v40, 0
    %92 = vmatprep.subr.mxu0 0.0
    %93 = vmatpush1.msra.mxu0 0.0
    %94 = vmatprep.subr.mxu0 0.0
    %95 = vmatpush1.msra.mxu0 0.0
    %96 = vmatprep.subr.mxu0 0.0
    %97 = vmatpush1.msra.mxu0 0.0
    %98 = vmatprep.subr.mxu0 0.0
    %99 = vmatpush1.msra.mxu0 0.0
    %100 = vmatprep.subr.mxu0 0.0
    %101 = vmatpush1.msra.mxu0 0.0
    %102 = vmatprep.subr.mxu0 0.0
    %103 = vmatpush1.msra.mxu0 0.0
    %104 = vmatprep.subr.mxu0 0.0
    %105 = vmatpush1.msra.mxu0 0.0
    %106 = vmatprep.subr.mxu0 0.0
    %107 = vmatpush1.msra.mxu0 0.0
    %108 = vmatprep.subr.mxu0 0.0
    %109 = vmatpush1.msra.mxu0 0.0
    %110 = vmatprep.subr.mxu0 0.0
    %111 = vmatpush1.msra.mxu0 0.0
    %112 = vmatprep.subr.mxu0 0.0
    %113 = vmatpush1.msra.mxu0 0.0
    %114 = vmatprep.subr.mxu0 0.0
    %115 = vmatpush1.msra.mxu0 0.0
    %116 = vmatprep.subr.mxu0 0.0
    %117 = vmatpush1.msra.mxu0 0.0
    %118 = vmatprep.subr.mxu0 0.0
    %119 = vmatpush1.msra.mxu0 0.0
    %120 = vmatprep.subr.mxu0 0.0
    %121 = vmatpush1.msra.mxu0 %v42
    %122 = vmatprep.subr.mxu0 0.0
    %123 = vmatpush1.msra.mxu0 %v41
    %124 = vmatprep.subr.mxu0 0.0
    %125 = vmatpush2.msra.mxu0 0.0
    %126 = vmatprep.subr.mxu0 0.0
    %127 = vmatpush2.msra.mxu0 0.0
    %128 = vmatprep.subr.mxu0 0.0
    %129 = vmatpush2.msra.mxu0 0.0
    %130 = vmatprep.subr.mxu0 0.0
    %131 = vmatpush2.msra.mxu0 0.0
    %132 = vmatprep.subr.mxu0 0.0
    %133 = vmatpush2.msra.mxu0 0.0
    %134 = vmatprep.subr.mxu0 0.0
    %135 = vmatpush2.msra.mxu0 0.0
    %136 = vmatprep.subr.mxu0 0.0
    %137 = vmatpush2.msra.mxu0 0.0
    %138 = vmatprep.subr.mxu0 0.0
    %139 = vmatpush2.msra.mxu0 0.0
    %140 = vmatprep.subr.mxu0 0.0
    %141 = vmatpush2.msra.mxu0 0.0
    %142 = vmatprep.subr.mxu0 0.0
    %143 = vmatpush2.msra.mxu0 0.0
    %144 = vmatprep.subr.mxu0 0.0
    %145 = vmatpush2.msra.mxu0 0.0
    %146 = vmatprep.subr.mxu0 0.0
    %147 = vmatpush2.msra.mxu0 0.0
    %148 = vmatprep.subr.mxu0 0.0
    %149 = vmatpush2.msra.mxu0 0.0
    %150 = vmatprep.subr.mxu0 0.0
    %151 = vmatpush2.msra.mxu0 0.0
    %152 = vmatprep.subr.mxu0 0.0
    %153 = vmatpush2.msra.mxu0 0.0
    %154 = vmatprep.subr.mxu0 0.0
    %155 = vmatpush2.msra.mxu0 0.0
    %156 = vmatprep.mubr.f32.mxu0 0.0
    %157 = vmatmul.mubr.f32.gmra.mxu0 %v45
    %v158 = vpop.f32.mrf.mxu0
    %v159 = vadd.f32 0.0, %v158
    %v160 = vpop.f32.mrf.mxu0
    %161 = vmatprep.mubr.f32.mxu0 0.0
    %162 = vmatmul.mubr.f32.gmra.mxu0 %v48
    %v163 = vpop.f32.mrf.mxu0
    %v164 = vadd.f32 0.0, %v163
    %v165 = vpop.f32.mrf.mxu0
    %166 = vmatprep.mubr.f32.mxu0 0.0
    %167 = vmatmul.mubr.f32.gmra.mxu0 %v51
    %v168 = vpop.f32.mrf.mxu0
    %v169 = vadd.f32 0.0, %v168
    %v170 = vpop.f32.mrf.mxu0
    %171 = vmatprep.mubr.f32.mxu0 0.0
    %172 = vmatmul.mubr.f32.gmra.mxu0 %v54
    %v173 = vpop.f32.mrf.mxu0
    %v174 = vadd.f32 0.0, %v173
    %v175 = vpop.f32.mrf.mxu0
    %176 = vmatprep.mubr.f32.mxu0 0.0
    %177 = vmatmul.mubr.f32.gmra.mxu0 %v57
    %v178 = vpop.f32.mrf.mxu0
    %v179 = vadd.f32 0.0, %v178
    %v180 = vpop.f32.mrf.mxu0
    %181 = vmatprep.mubr.f32.mxu0 0.0
    %182 = vmatmul.mubr.f32.gmra.mxu0 %v60
    %v183 = vpop.f32.mrf.mxu0
    %v184 = vadd.f32 0.0, %v183
    %v185 = vpop.f32.mrf.mxu0
    %186 = vmatprep.mubr.f32.mxu0 0.0
    %187 = vmatmul.mubr.f32.gmra.mxu0 %v63
    %v188 = vpop.f32.mrf.mxu0
    %v189 = vadd.f32 0.0, %v188
    %v190 = vpop.f32.mrf.mxu0
    %191 = vmatprep.mubr.f32.mxu0 0.0
    %192 = vmatmul.mubr.f32.gmra.mxu0 %v66
    %v193 = vpop.f32.mrf.mxu0
    %v194 = vadd.f32 0.0, %v193
    %v195 = vpop.f32.mrf.mxu0
    %196 = vmatprep.mubr.f32.mxu0 0.0
    %197 = vmatmul.mubr.f32.gmra.mxu0 %v69
    %v198 = vpop.f32.mrf.mxu0
    %v199 = vadd.f32 0.0, %v198
    %v200 = vpop.f32.mrf.mxu0
    %201 = vmatprep.mubr.f32.mxu0 0.0
    %202 = vmatmul.mubr.f32.gmra.mxu0 %v72
    %v203 = vpop.f32.mrf.mxu0
    %v204 = vadd.f32 0.0, %v203
    %v205 = vpop.f32.mrf.mxu0
    %206 = vmatprep.mubr.f32.mxu0 0.0
    %207 = vmatmul.mubr.f32.gmra.mxu0 %v75
    %v208 = vpop.f32.mrf.mxu0
    %v209 = vadd.f32 0.0, %v208
    %v210 = vpop.f32.mrf.mxu0
    %211 = vmatprep.mubr.f32.mxu0 0.0
    %212 = vmatmul.mubr.f32.gmra.mxu0 %v78
    %v213 = vpop.f32.mrf.mxu0
    %v214 = vadd.f32 0.0, %v213
    %v215 = vpop.f32.mrf.mxu0
    %216 = vmatprep.mubr.f32.mxu0 0.0
    %217 = vmatmul.mubr.f32.gmra.mxu0 %v81
    %v218 = vpop.f32.mrf.mxu0
    %v219 = vadd.f32 0.0, %v218
    %v220 = vpop.f32.mrf.mxu0
    %221 = vmatprep.mubr.f32.mxu0 0.0
    %222 = vmatmul.mubr.f32.gmra.mxu0 %v84
    %v223 = vpop.f32.mrf.mxu0
    %v224 = vadd.f32 0.0, %v223
    %v225 = vpop.f32.mrf.mxu0
    %226 = vmatprep.mubr.f32.mxu0 0.0
    %227 = vmatmul.mubr.f32.gmra.mxu0 %v87
    %v228 = vpop.f32.mrf.mxu0
    %v229 = vadd.f32 0.0, %v228
    %v230 = vpop.f32.mrf.mxu0
    %231 = vmatprep.mubr.f32.mxu0 0.0
    %232 = vmatmul.mubr.f32.gmra.mxu0 %v90
    %v233 = vpop.f32.mrf.mxu0
    %v234 = vadd.f32 0.0, %v233
    %v235 = vpop.f32.mrf.mxu0
    %236 = vdwg.mxu0
    %vm237 = vcmask 523264
    %238 = vst.msk [vmem:[%s2] sm:$0xff] %vm237, %v159
    %239 = vst.msk [vmem:[%s2 + $0x8] sm:$0xff] %vm237, %v164
    %240 = vst.msk [vmem:[%s2 + $0x10] sm:$0xff] %vm237, %v169
    %241 = vst.msk [vmem:[%s2 + $0x18] sm:$0xff] %vm237, %v174
    %242 = vst.msk [vmem:[%s2 + $0x20] sm:$0xff] %vm237, %v179
    %243 = vst.msk [vmem:[%s2 + $0x28] sm:$0xff] %vm237, %v184
    %244 = vst.msk [vmem:[%s2 + $0x30] sm:$0xff] %vm237, %v189
    %245 = vst.msk [vmem:[%s2 + $0x38] sm:$0xff] %vm237, %v194
    %246 = vst.msk [vmem:[%s2 + $0x40] sm:$0xff] %vm237, %v199
    %247 = vst.msk [vmem:[%s2 + $0x48] sm:$0xff] %vm237, %v204
    %248 = vst.msk [vmem:[%s2 + $0x50] sm:$0xff] %vm237, %v209
    %249 = vst.msk [vmem:[%s2 + $0x58] sm:$0xff] %vm237, %v214
    %250 = vst.msk [vmem:[%s2 + $0x60] sm:$0xff] %vm237, %v219
    %251 = vst.msk [vmem:[%s2 + $0x68] sm:$0xff] %vm237, %v224
    %252 = vst.msk [vmem:[%s2 + $0x70] sm:$0xff] %vm237, %v229
    %253 = vst.msk [vmem:[%s2 + $0x78] sm:$0xff] %vm237, %v234
    // Predicated region
    $region14: #{interpolate_nearest.1} parent=1 // pred_check
      _
    $region15: #{interpolate_nearest.1} parent=1 // pred_check_branch
      %255 = sbr.rel (0) target = $region17
    $region16: #{interpolate_nearest.1} parent=1 // pred_region
      _
    $region17: #{interpolate_nearest.1} parent=1 // pred_fallthru
      _
    // Predicated region
    $region18: #{interpolate_nearest.1} parent=1 // pred_check
      _
    $region19: #{interpolate_nearest.1} parent=1 // pred_check_branch
      %257 = sbr.rel (0) target = $region21
    $region20: #{interpolate_nearest.1} parent=1 // pred_region
      _
    $region21: #{interpolate_nearest.1} parent=1 // pred_fallthru
      _
    %258 = vsyncpa [#allocation3], 1

</llo_original>
